<compile_context>
chip_gen: v6e
topology: v6e:2x2x1
jax: 0.10.0
libtpu: 0.0.40
codegen_flags: <defaults>
</compile_context>

<pallas_src>
import functools
import math

import jax
import jax.numpy as jnp
from jax.experimental import pallas as pl
from jax.experimental.pallas import tpu as pltpu


LANE = 128
# Below this, kernel-launch + grid-step overhead dwarfs the copy -> return x.
_SHORT_CIRCUIT_BYTES = 1 << 20          # 1 MiB
# Per-block byte budget for the streaming-copy path.  2 MiB blocks,
# double-buffered for both input and output (2 * 2 * 2 MiB = 8 MiB VMEM),
# stay well under v5e's 16 MiB scoped default and v6e/v7x limits.
_BLOCK_BYTES = 2 << 20


# ----------------------------------------------------------------------------
# Kernel
# ----------------------------------------------------------------------------
def _copy_kernel(x_ref, o_ref):
    # Pure pass-through: vreg-aligned load + unmasked lane-dense store per tile.
    o_ref[...] = x_ref[...]


# ----------------------------------------------------------------------------
# Helpers
# ----------------------------------------------------------------------------
def _pick_slab_width(numel):
    """Widest lane-dense last dim (multiple of 128, up to 2048) dividing numel."""
    for w in (2048, 1024, 512, 256, LANE):
        if numel % w == 0:
            return w
    return None


def _pick_tile_rows(rows, width, itemsize):
    """Rows per block targeting ~_BLOCK_BYTES, multiple of 8 (or full extent)."""
    budget_rows = max(8, _BLOCK_BYTES // (width * itemsize))
    budget_rows = (budget_rows // 8) * 8
    if rows <= budget_rows:
        return rows                      # full extent: always a legal block dim
    return budget_rows


@functools.partial(jax.jit, static_argnums=(1, 2, 3))
def _identity_lane_dense(x, rows, width, tile_rows):
    """Identity via a tiled, lane-dense Pallas copy of x viewed as (rows, width)."""
    # Row-major flatten of a contiguous array: a free bitcast-reshape, no relayout.
    x2d = x.reshape(rows, width)
    nbytes = x.size * jnp.dtype(x.dtype).itemsize
    y2d = pl.pallas_call(
        _copy_kernel,
        out_shape=jax.ShapeDtypeStruct((rows, width), x.dtype),
        grid=(pl.cdiv(rows, tile_rows),),
        in_specs=[pl.BlockSpec((tile_rows, width), lambda i: (i, 0))],
        out_specs=pl.BlockSpec((tile_rows, width), lambda i: (i, 0)),
        compiler_params=pltpu.CompilerParams(
            dimension_semantics=("parallel",),   # shards copy across TCs on v7x
        ),
        cost_estimate=pl.CostEstimate(
            flops=0, transcendentals=0, bytes_accessed=2 * nbytes
        ),
    )(x2d)
    return y2d.reshape(x.shape)


# ----------------------------------------------------------------------------
# Module wrapper (mirrors the PyTorch `Input` module)
# ----------------------------------------------------------------------------
class InputPallas:
    """Pallas/JAX equivalent of the PyTorch `Input` module."""

    def __init__(self, shape, dtype=jnp.float32):
        self.shape = tuple(int(d) for d in shape)
        self.dtype = jnp.dtype(dtype)
        self._numel = math.prod(self.shape) if self.shape else 1

    def get_zeros_tensor(self, batch_size=1):
        """Batch of zeros with shape [batch_size, *self.shape] (XLA constant fill)."""
        return jnp.zeros((batch_size, *self.shape), dtype=self.dtype)

    def __call__(self, x):
        return self.forward(x)

    def forward(self, x):
        """Forward: assert shape/dtype, then identity."""
        assert tuple(x.shape) == self.shape, (
            "The shape of x value is not equal to input shape"
        )
        assert jnp.dtype(x.dtype) == self.dtype, (
            f"{self.dtype} expected, but we received {x.dtype}"
        )

        nbytes = self._numel * self.dtype.itemsize
        width = _pick_slab_width(self._numel)
        if width is None or nbytes < _SHORT_CIRCUIT_BYTES:
            # Identity is free: avoid 2*numel HBM traffic and launch overhead.
            return x

        rows = self._numel // width
        tile_rows = _pick_tile_rows(rows, width, self.dtype.itemsize)
        return _identity_lane_dense(x, rows, width, tile_rows)


# ----------------------------------------------------------------------------
# Main
# ----------------------------------------------------------------------------
if __name__ == "__main__":
    key = jax.random.PRNGKey(0)
    k_small, k_large = jax.random.split(key)

    # 1) Small CHW input (4, 16, 16): takes the short-circuit return-x path.
    small_shape = (4, 16, 16)
    mod_small = InputPallas(small_shape, dtype=jnp.float32)
    x_small = jax.random.normal(k_small, small_shape, dtype=jnp.float32)
    y_small = jax.block_until_ready(mod_small(x_small))
    assert y_small.shape == small_shape and y_small.dtype == jnp.float32
    assert bool(jnp.array_equal(y_small, x_small)), "small identity mismatch"

    # 2) 1 MiB input (4, 256, 256): exercises the lane-dense Pallas copy kernel
    #    (numel = 262144 -> slab (128, 2048), single ~1 MiB block).
    large_shape = (4, 256, 256)
    mod_large = InputPallas(large_shape, dtype=jnp.float32)
    x_large = jax.random.normal(k_large, large_shape, dtype=jnp.float32)
    y_large = jax.block_until_ready(mod_large(x_large))
    assert y_large.shape == large_shape and y_large.dtype == jnp.float32
    assert bool(jnp.array_equal(y_large, x_large)), "Pallas identity mismatch"

    # 3) get_zeros_tensor equivalent (batch of 2).
    z = jax.block_until_ready(mod_small.get_zeros_tensor(batch_size=2))
    assert z.shape == (2, *small_shape) and z.dtype == jnp.float32
    assert bool(jnp.all(z == 0.0)), "zeros mismatch"

    print("KERNEL_OK")
</pallas_src>

<mosaic_0001>
module attributes {stable_mosaic.version = 11 : i64} {
  func.func @_copy_kernel(%arg0: i32, %arg1: memref<128x2048xf32, #tpu.memory_space<vmem>>, %arg2: memref<128x2048xf32, #tpu.memory_space<vmem>>) attributes {dimension_semantics = [#tpu.dimension_semantics<parallel>], iteration_bounds = array<i64: 1>, scalar_prefetch = 0 : i64, scratch_operands = 0 : i64, tpu.core_type = #tpu.core_type<tc>, window_params = [{transform_indices = @transform_0, window_bounds = array<i64: 128, 2048>}, {transform_indices = @transform_1, window_bounds = array<i64: 128, 2048>}]} {
    %c0 = arith.constant 0 : index
    %c0_0 = arith.constant 0 : index
    %0 = vector.load %arg1[%c0, %c0_0] : memref<128x2048xf32, #tpu.memory_space<vmem>>, vector<128x2048xf32>
    %c0_1 = arith.constant 0 : index
    %c0_2 = arith.constant 0 : index
    %1 = vector.load %arg2[%c0_1, %c0_2] : memref<128x2048xf32, #tpu.memory_space<vmem>>, vector<128x2048xf32>
    tpu.vector_store %arg2[%c0_1, %c0_2], %0 {strides = array<i32>} : memref<128x2048xf32, #tpu.memory_space<vmem>>, vector<128x2048xf32>,
    return
  }
  func.func @transform_0(%arg0: i32) -> (i32, i32) {
    %c0_i32 = arith.constant 0 : i32
    %c0_i32_0 = arith.constant 0 : i32
    return %arg0, %c0_i32 : i32, i32
  }
  func.func @transform_1(%arg0: i32) -> (i32, i32) {
    %c0_i32 = arith.constant 0 : i32
    %c0_i32_0 = arith.constant 0 : i32
    return %arg0, %c0_i32 : i32, i32
  }
}

</mosaic_0001>

<llo_original>
// kernel: _identity_lane_dense.1
$region0: #{_identity_lane_dense.1}
  #allocation0 [shape = 'u32[]', space=smem, size = 0x4, offset = 0x4, fixed_abs, tag = 'smem constant byte address 0x4 - core index']
  #allocation1 [shape = 'u32[144,128]{1,0:T(1,128)}', space=vmem, size = 0x12000, scoped, tag = 'internal scratch']
  %s0 = inlined_call_operand.vmem [shape: f32[128,2048], index: 0, kind: input, shape index: {}]
  %s1 = inlined_call_operand.vmem [shape: f32[128,2048], index: 1, kind: output, shape index: {}]
  %s2 = sld [smem:[#allocation0]]
  $region14: #{_identity_lane_dense.1} parent=0
    _
  %s4 = ssub.s32 1, %s2
  %s5 = scalar_select 0, %s4, %s2
  // Predicated region
  $region2: #{_identity_lane_dense.1} parent=0 // pred_check
    _
  $region3: #{_identity_lane_dense.1} parent=0 // pred_check_branch
    %7 = sbr.rel (0) target = $region5
  $region4: #{_identity_lane_dense.1} parent=0 // pred_region
    _
  $region5: #{_identity_lane_dense.1} parent=0 // pred_fallthru
    _
  %v8 = vld [vmem:[%s0] sm:$0xff]
  %v9 = vld [vmem:[%s0 + $0x8] sm:$0xff]
  %v10 = vld [vmem:[%s0 + $0x10] sm:$0xff]
  %v11 = vld [vmem:[%s0 + $0x18] sm:$0xff]
  %v12 = vld [vmem:[%s0 + $0x20] sm:$0xff]
  %v13 = vld [vmem:[%s0 + $0x28] sm:$0xff]
  %v14 = vld [vmem:[%s0 + $0x30] sm:$0xff]
  %v15 = vld [vmem:[%s0 + $0x38] sm:$0xff]
  %v16 = vld [vmem:[%s0 + $0x40] sm:$0xff]
  %v17 = vld [vmem:[%s0 + $0x48] sm:$0xff]
  %v18 = vld [vmem:[%s0 + $0x50] sm:$0xff]
  %v19 = vld [vmem:[%s0 + $0x58] sm:$0xff]
  %v20 = vld [vmem:[%s0 + $0x60] sm:$0xff]
  %v21 = vld [vmem:[%s0 + $0x68] sm:$0xff]
  %v22 = vld [vmem:[%s0 + $0x70] sm:$0xff]
  %v23 = vld [vmem:[%s0 + $0x78] sm:$0xff]
  %v24 = vld [vmem:[%s0 + $0x80] sm:$0xff]
  %v25 = vld [vmem:[%s0 + $0x88] sm:$0xff]
  %v26 = vld [vmem:[%s0 + $0x90] sm:$0xff]
  %v27 = vld [vmem:[%s0 + $0x98] sm:$0xff]
  %v28 = vld [vmem:[%s0 + $0xa0] sm:$0xff]
  %v29 = vld [vmem:[%s0 + $0xa8] sm:$0xff]
  %v30 = vld [vmem:[%s0 + $0xb0] sm:$0xff]
  %v31 = vld [vmem:[%s0 + $0xb8] sm:$0xff]
  %v32 = vld [vmem:[%s0 + $0xc0] sm:$0xff]
  %v33 = vld [vmem:[%s0 + $0xc8] sm:$0xff]
  %v34 = vld [vmem:[%s0 + $0xd0] sm:$0xff]
  %v35 = vld [vmem:[%s0 + $0xd8] sm:$0xff]
  %v36 = vld [vmem:[%s0 + $0xe0] sm:$0xff]
  %v37 = vld [vmem:[%s0 + $0xe8] sm:$0xff]
  %v38 = vld [vmem:[%s0 + $0xf0] sm:$0xff]
  %v39 = vld [vmem:[%s0 + $0xf8] sm:$0xff]
  %v40 = vld [vmem:[%s0 + $0x100] sm:$0xff]
  %v41 = vld [vmem:[%s0 + $0x108] sm:$0xff]
  %v42 = vld [vmem:[%s0 + $0x110] sm:$0xff]
  %v43 = vld [vmem:[%s0 + $0x118] sm:$0xff]
  %v44 = vld [vmem:[%s0 + $0x120] sm:$0xff]
  %v45 = vld [vmem:[%s0 + $0x128] sm:$0xff]
  %v46 = vld [vmem:[%s0 + $0x130] sm:$0xff]
  %v47 = vld [vmem:[%s0 + $0x138] sm:$0xff]
  %v48 = vld [vmem:[%s0 + $0x140] sm:$0xff]
  %v49 = vld [vmem:[%s0 + $0x148] sm:$0xff]
  %v50 = vld [vmem:[%s0 + $0x150] sm:$0xff]
  %v51 = vld [vmem:[%s0 + $0x158] sm:$0xff]
  %v52 = vld [vmem:[%s0 + $0x160] sm:$0xff]
  %v53 = vld [vmem:[%s0 + $0x168] sm:$0xff]
  %v54 = vld [vmem:[%s0 + $0x170] sm:$0xff]
  %v55 = vld [vmem:[%s0 + $0x178] sm:$0xff]
  %v56 = vld [vmem:[%s0 + $0x180] sm:$0xff]
  %v57 = vld [vmem:[%s0 + $0x188] sm:$0xff]
  %v58 = vld [vmem:[%s0 + $0x190] sm:$0xff]
  %v59 = vld [vmem:[%s0 + $0x198] sm:$0xff]
  %v60 = vld [vmem:[%s0 + $0x1a0] sm:$0xff]
  %v61 = vld [vmem:[%s0 + $0x1a8] sm:$0xff]
  %v62 = vld [vmem:[%s0 + $0x1b0] sm:$0xff]
  %v63 = vld [vmem:[%s0 + $0x1b8] sm:$0xff]
  %v64 = vld [vmem:[%s0 + $0x1c0] sm:$0xff]
  %v65 = vld [vmem:[%s0 + $0x1c8] sm:$0xff]
  %v66 = vld [vmem:[%s0 + $0x1d0] sm:$0xff]
  %v67 = vld [vmem:[%s0 + $0x1d8] sm:$0xff]
  %v68 = vld [vmem:[%s0 + $0x1e0] sm:$0xff]
  %v69 = vld [vmem:[%s0 + $0x1e8] sm:$0xff]
  %v70 = vld [vmem:[%s0 + $0x1f0] sm:$0xff]
  %v71 = vld [vmem:[%s0 + $0x1f8] sm:$0xff]
  %v72 = vld [vmem:[%s0 + $0x200] sm:$0xff]
  %v73 = vld [vmem:[%s0 + $0x208] sm:$0xff]
  %v74 = vld [vmem:[%s0 + $0x210] sm:$0xff]
  %v75 = vld [vmem:[%s0 + $0x218] sm:$0xff]
  %v76 = vld [vmem:[%s0 + $0x220] sm:$0xff]
  %v77 = vld [vmem:[%s0 + $0x228] sm:$0xff]
  %v78 = vld [vmem:[%s0 + $0x230] sm:$0xff]
  %v79 = vld [vmem:[%s0 + $0x238] sm:$0xff]
  %v80 = vld [vmem:[%s0 + $0x240] sm:$0xff]
  %v81 = vld [vmem:[%s0 + $0x248] sm:$0xff]
  %v82 = vld [vmem:[%s0 + $0x250] sm:$0xff]
  %v83 = vld [vmem:[%s0 + $0x258] sm:$0xff]
  %v84 = vld [vmem:[%s0 + $0x260] sm:$0xff]
  %v85 = vld [vmem:[%s0 + $0x268] sm:$0xff]
  %v86 = vld [vmem:[%s0 + $0x270] sm:$0xff]
  %v87 = vld [vmem:[%s0 + $0x278] sm:$0xff]
  %v88 = vld [vmem:[%s0 + $0x280] sm:$0xff]
  %v89 = vld [vmem:[%s0 + $0x288] sm:$0xff]
  %v90 = vld [vmem:[%s0 + $0x290] sm:$0xff]
  %v91 = vld [vmem:[%s0 + $0x298] sm:$0xff]
  %v92 = vld [vmem:[%s0 + $0x2a0] sm:$0xff]
  %v93 = vld [vmem:[%s0 + $0x2a8] sm:$0xff]
  %v94 = vld [vmem:[%s0 + $0x2b0] sm:$0xff]
  %v95 = vld [vmem:[%s0 + $0x2b8] sm:$0xff]
  %v96 = vld [vmem:[%s0 + $0x2c0] sm:$0xff]
  %v97 = vld [vmem:[%s0 + $0x2c8] sm:$0xff]
  %v98 = vld [vmem:[%s0 + $0x2d0] sm:$0xff]
  %v99 = vld [vmem:[%s0 + $0x2d8] sm:$0xff]
  %v100 = vld [vmem:[%s0 + $0x2e0] sm:$0xff]
  %v101 = vld [vmem:[%s0 + $0x2e8] sm:$0xff]
  %v102 = vld [vmem:[%s0 + $0x2f0] sm:$0xff]
  %v103 = vld [vmem:[%s0 + $0x2f8] sm:$0xff]
  %v104 = vld [vmem:[%s0 + $0x300] sm:$0xff]
  %v105 = vld [vmem:[%s0 + $0x308] sm:$0xff]
  %v106 = vld [vmem:[%s0 + $0x310] sm:$0xff]
  %v107 = vld [vmem:[%s0 + $0x318] sm:$0xff]
  %v108 = vld [vmem:[%s0 + $0x320] sm:$0xff]
  %v109 = vld [vmem:[%s0 + $0x328] sm:$0xff]
  %v110 = vld [vmem:[%s0 + $0x330] sm:$0xff]
  %v111 = vld [vmem:[%s0 + $0x338] sm:$0xff]
  %v112 = vld [vmem:[%s0 + $0x340] sm:$0xff]
  %v113 = vld [vmem:[%s0 + $0x348] sm:$0xff]
  %v114 = vld [vmem:[%s0 + $0x350] sm:$0xff]
  %v115 = vld [vmem:[%s0 + $0x358] sm:$0xff]
  %v116 = vld [vmem:[%s0 + $0x360] sm:$0xff]
  %v117 = vld [vmem:[%s0 + $0x368] sm:$0xff]
  %v118 = vld [vmem:[%s0 + $0x370] sm:$0xff]
  %v119 = vld [vmem:[%s0 + $0x378] sm:$0xff]
  %v120 = vld [vmem:[%s0 + $0x380] sm:$0xff]
  %v121 = vld [vmem:[%s0 + $0x388] sm:$0xff]
  %v122 = vld [vmem:[%s0 + $0x390] sm:$0xff]
  %v123 = vld [vmem:[%s0 + $0x398] sm:$0xff]
  %v124 = vld [vmem:[%s0 + $0x3a0] sm:$0xff]
  %v125 = vld [vmem:[%s0 + $0x3a8] sm:$0xff]
  %v126 = vld [vmem:[%s0 + $0x3b0] sm:$0xff]
  %v127 = vld [vmem:[%s0 + $0x3b8] sm:$0xff]
  %v128 = vld [vmem:[%s0 + $0x3c0] sm:$0xff]
  %v129 = vld [vmem:[%s0 + $0x3c8] sm:$0xff]
  %v130 = vld [vmem:[%s0 + $0x3d0] sm:$0xff]
  %v131 = vld [vmem:[%s0 + $0x3d8] sm:$0xff]
  %v132 = vld [vmem:[%s0 + $0x3e0] sm:$0xff]
  %v133 = vld [vmem:[%s0 + $0x3e8] sm:$0xff]
  %v134 = vld [vmem:[%s0 + $0x3f0] sm:$0xff]
  %v135 = vld [vmem:[%s0 + $0x3f8] sm:$0xff]
  %v136 = vld [vmem:[%s0 + $0x400] sm:$0xff]
  %v137 = vld [vmem:[%s0 + $0x408] sm:$0xff]
  %v138 = vld [vmem:[%s0 + $0x410] sm:$0xff]
  %v139 = vld [vmem:[%s0 + $0x418] sm:$0xff]
  %v140 = vld [vmem:[%s0 + $0x420] sm:$0xff]
  %v141 = vld [vmem:[%s0 + $0x428] sm:$0xff]
  %v142 = vld [vmem:[%s0 + $0x430] sm:$0xff]
  %v143 = vld [vmem:[%s0 + $0x438] sm:$0xff]
  %v144 = vld [vmem:[%s0 + $0x440] sm:$0xff]
  %v145 = vld [vmem:[%s0 + $0x448] sm:$0xff]
  %v146 = vld [vmem:[%s0 + $0x450] sm:$0xff]
  %v147 = vld [vmem:[%s0 + $0x458] sm:$0xff]
  %v148 = vld [vmem:[%s0 + $0x460] sm:$0xff]
  %v149 = vld [vmem:[%s0 + $0x468] sm:$0xff]
  %v150 = vld [vmem:[%s0 + $0x470] sm:$0xff]
  %v151 = vld [vmem:[%s0 + $0x478] sm:$0xff]
  %v152 = vld [vmem:[%s0 + $0x480] sm:$0xff]
  %v153 = vld [vmem:[%s0 + $0x488] sm:$0xff]
  %v154 = vld [vmem:[%s0 + $0x490] sm:$0xff]
  %v155 = vld [vmem:[%s0 + $0x498] sm:$0xff]
  %v156 = vld [vmem:[%s0 + $0x4a0] sm:$0xff]
  %v157 = vld [vmem:[%s0 + $0x4a8] sm:$0xff]
  %v158 = vld [vmem:[%s0 + $0x4b0] sm:$0xff]
  %v159 = vld [vmem:[%s0 + $0x4b8] sm:$0xff]
  %v160 = vld [vmem:[%s0 + $0x4c0] sm:$0xff]
  %v161 = vld [vmem:[%s0 + $0x4c8] sm:$0xff]
  %v162 = vld [vmem:[%s0 + $0x4d0] sm:$0xff]
  %v163 = vld [vmem:[%s0 + $0x4d8] sm:$0xff]
  %v164 = vld [vmem:[%s0 + $0x4e0] sm:$0xff]
  %v165 = vld [vmem:[%s0 + $0x4e8] sm:$0xff]
  %v166 = vld [vmem:[%s0 + $0x4f0] sm:$0xff]
  %v167 = vld [vmem:[%s0 + $0x4f8] sm:$0xff]
  %v168 = vld [vmem:[%s0 + $0x500] sm:$0xff]
  %v169 = vld [vmem:[%s0 + $0x508] sm:$0xff]
  %v170 = vld [vmem:[%s0 + $0x510] sm:$0xff]
  %v171 = vld [vmem:[%s0 + $0x518] sm:$0xff]
  %v172 = vld [vmem:[%s0 + $0x520] sm:$0xff]
  %v173 = vld [vmem:[%s0 + $0x528] sm:$0xff]
  %v174 = vld [vmem:[%s0 + $0x530] sm:$0xff]
  %v175 = vld [vmem:[%s0 + $0x538] sm:$0xff]
  %v176 = vld [vmem:[%s0 + $0x540] sm:$0xff]
  %v177 = vld [vmem:[%s0 + $0x548] sm:$0xff]
  %v178 = vld [vmem:[%s0 + $0x550] sm:$0xff]
  %v179 = vld [vmem:[%s0 + $0x558] sm:$0xff]
  %v180 = vld [vmem:[%s0 + $0x560] sm:$0xff]
  %v181 = vld [vmem:[%s0 + $0x568] sm:$0xff]
  %v182 = vld [vmem:[%s0 + $0x570] sm:$0xff]
  %v183 = vld [vmem:[%s0 + $0x578] sm:$0xff]
  %v184 = vld [vmem:[%s0 + $0x580] sm:$0xff]
  %v185 = vld [vmem:[%s0 + $0x588] sm:$0xff]
  %v186 = vld [vmem:[%s0 + $0x590] sm:$0xff]
  %v187 = vld [vmem:[%s0 + $0x598] sm:$0xff]
  %v188 = vld [vmem:[%s0 + $0x5a0] sm:$0xff]
  %v189 = vld [vmem:[%s0 + $0x5a8] sm:$0xff]
  %v190 = vld [vmem:[%s0 + $0x5b0] sm:$0xff]
  %v191 = vld [vmem:[%s0 + $0x5b8] sm:$0xff]
  %v192 = vld [vmem:[%s0 + $0x5c0] sm:$0xff]
  %v193 = vld [vmem:[%s0 + $0x5c8] sm:$0xff]
  %v194 = vld [vmem:[%s0 + $0x5d0] sm:$0xff]
  %v195 = vld [vmem:[%s0 + $0x5d8] sm:$0xff]
  %v196 = vld [vmem:[%s0 + $0x5e0] sm:$0xff]
  %v197 = vld [vmem:[%s0 + $0x5e8] sm:$0xff]
  %v198 = vld [vmem:[%s0 + $0x5f0] sm:$0xff]
  %v199 = vld [vmem:[%s0 + $0x5f8] sm:$0xff]
  %v200 = vld [vmem:[%s0 + $0x600] sm:$0xff]
  %v201 = vld [vmem:[%s0 + $0x608] sm:$0xff]
  %v202 = vld [vmem:[%s0 + $0x610] sm:$0xff]
  %v203 = vld [vmem:[%s0 + $0x618] sm:$0xff]
  %v204 = vld [vmem:[%s0 + $0x620] sm:$0xff]
  %v205 = vld [vmem:[%s0 + $0x628] sm:$0xff]
  %v206 = vld [vmem:[%s0 + $0x630] sm:$0xff]
  %v207 = vld [vmem:[%s0 + $0x638] sm:$0xff]
  %v208 = vld [vmem:[%s0 + $0x640] sm:$0xff]
  %v209 = vld [vmem:[%s0 + $0x648] sm:$0xff]
  %v210 = vld [vmem:[%s0 + $0x650] sm:$0xff]
  %v211 = vld [vmem:[%s0 + $0x658] sm:$0xff]
  %v212 = vld [vmem:[%s0 + $0x660] sm:$0xff]
  %v213 = vld [vmem:[%s0 + $0x668] sm:$0xff]
  %v214 = vld [vmem:[%s0 + $0x670] sm:$0xff]
  %v215 = vld [vmem:[%s0 + $0x678] sm:$0xff]
  %v216 = vld [vmem:[%s0 + $0x680] sm:$0xff]
  %v217 = vld [vmem:[%s0 + $0x688] sm:$0xff]
  %v218 = vld [vmem:[%s0 + $0x690] sm:$0xff]
  %v219 = vld [vmem:[%s0 + $0x698] sm:$0xff]
  %v220 = vld [vmem:[%s0 + $0x6a0] sm:$0xff]
  %v221 = vld [vmem:[%s0 + $0x6a8] sm:$0xff]
  %v222 = vld [vmem:[%s0 + $0x6b0] sm:$0xff]
  %v223 = vld [vmem:[%s0 + $0x6b8] sm:$0xff]
  %v224 = vld [vmem:[%s0 + $0x6c0] sm:$0xff]
  %v225 = vld [vmem:[%s0 + $0x6c8] sm:$0xff]
  %v226 = vld [vmem:[%s0 + $0x6d0] sm:$0xff]
  %v227 = vld [vmem:[%s0 + $0x6d8] sm:$0xff]
  %v228 = vld [vmem:[%s0 + $0x6e0] sm:$0xff]
  %v229 = vld [vmem:[%s0 + $0x6e8] sm:$0xff]
  %v230 = vld [vmem:[%s0 + $0x6f0] sm:$0xff]
  %v231 = vld [vmem:[%s0 + $0x6f8] sm:$0xff]
  %v232 = vld [vmem:[%s0 + $0x700] sm:$0xff]
  %v233 = vld [vmem:[%s0 + $0x708] sm:$0xff]
  %v234 = vld [vmem:[%s0 + $0x710] sm:$0xff]
  %v235 = vld [vmem:[%s0 + $0x718] sm:$0xff]
  %v236 = vld [vmem:[%s0 + $0x720] sm:$0xff]
  %v237 = vld [vmem:[%s0 + $0x728] sm:$0xff]
  %v238 = vld [vmem:[%s0 + $0x730] sm:$0xff]
  %v239 = vld [vmem:[%s0 + $0x738] sm:$0xff]
  %v240 = vld [vmem:[%s0 + $0x740] sm:$0xff]
  %v241 = vld [vmem:[%s0 + $0x748] sm:$0xff]
  %v242 = vld [vmem:[%s0 + $0x750] sm:$0xff]
  %v243 = vld [vmem:[%s0 + $0x758] sm:$0xff]
  %v244 = vld [vmem:[%s0 + $0x760] sm:$0xff]
  %v245 = vld [vmem:[%s0 + $0x768] sm:$0xff]
  %v246 = vld [vmem:[%s0 + $0x770] sm:$0xff]
  %v247 = vld [vmem:[%s0 + $0x778] sm:$0xff]
  %v248 = vld [vmem:[%s0 + $0x780] sm:$0xff]
  %v249 = vld [vmem:[%s0 + $0x788] sm:$0xff]
  %v250 = vld [vmem:[%s0 + $0x790] sm:$0xff]
  %v251 = vld [vmem:[%s0 + $0x798] sm:$0xff]
  %v252 = vld [vmem:[%s0 + $0x7a0] sm:$0xff]
  %v253 = vld [vmem:[%s0 + $0x7a8] sm:$0xff]
  %v254 = vld [vmem:[%s0 + $0x7b0] sm:$0xff]
  %v255 = vld [vmem:[%s0 + $0x7b8] sm:$0xff]
  %v256 = vld [vmem:[%s0 + $0x7c0] sm:$0xff]
  %v257 = vld [vmem:[%s0 + $0x7c8] sm:$0xff]
  %v258 = vld [vmem:[%s0 + $0x7d0] sm:$0xff]
  %v259 = vld [vmem:[%s0 + $0x7d8] sm:$0xff]
  %v260 = vld [vmem:[%s0 + $0x7e0] sm:$0xff]
  %v261 = vld [vmem:[%s0 + $0x7e8] sm:$0xff]
  %v262 = vld [vmem:[%s0 + $0x7f0] sm:$0xff]
  %v263 = vld [vmem:[%s0 + $0x7f8] sm:$0xff]
  %264 = vst [vmem:[%s1] sm:$0xff] %v8
  %265 = vst [vmem:[%s1 + $0x8] sm:$0xff] %v9
  %266 = vst [vmem:[%s1 + $0x10] sm:$0xff] %v10
  %267 = vst [vmem:[%s1 + $0x18] sm:$0xff] %v11
  %268 = vst [vmem:[%s1 + $0x20] sm:$0xff] %v12
  %269 = vst [vmem:[%s1 + $0x28] sm:$0xff] %v13
  %270 = vst [vmem:[%s1 + $0x30] sm:$0xff] %v14
  %271 = vst [vmem:[%s1 + $0x38] sm:$0xff] %v15
  %272 = vst [vmem:[%s1 + $0x40] sm:$0xff] %v16
  %273 = vst [vmem:[%s1 + $0x48] sm:$0xff] %v17
  %274 = vst [vmem:[%s1 + $0x50] sm:$0xff] %v18
  %275 = vst [vmem:[%s1 + $0x58] sm:$0xff] %v19
  %276 = vst [vmem:[%s1 + $0x60] sm:$0xff] %v20
  %277 = vst [vmem:[%s1 + $0x68] sm:$0xff] %v21
  %278 = vst [vmem:[%s1 + $0x70] sm:$0xff] %v22
  %279 = vst [vmem:[%s1 + $0x78] sm:$0xff] %v23
  %280 = vst [vmem:[%s1 + $0x80] sm:$0xff] %v24
  %281 = vst [vmem:[%s1 + $0x88] sm:$0xff] %v25
  %282 = vst [vmem:[%s1 + $0x90] sm:$0xff] %v26
  %283 = vst [vmem:[%s1 + $0x98] sm:$0xff] %v27
  %284 = vst [vmem:[%s1 + $0xa0] sm:$0xff] %v28
  %285 = vst [vmem:[%s1 + $0xa8] sm:$0xff] %v29
  %286 = vst [vmem:[%s1 + $0xb0] sm:$0xff] %v30
  %287 = vst [vmem:[%s1 + $0xb8] sm:$0xff] %v31
  %288 = vst [vmem:[%s1 + $0xc0] sm:$0xff] %v32
  %289 = vst [vmem:[%s1 + $0xc8] sm:$0xff] %v33
  %290 = vst [vmem:[%s1 + $0xd0] sm:$0xff] %v34
  %291 = vst [vmem:[%s1 + $0xd8] sm:$0xff] %v35
  %292 = vst [vmem:[%s1 + $0xe0] sm:$0xff] %v36
  %293 = vst [vmem:[%s1 + $0xe8] sm:$0xff] %v37
  %294 = vst [vmem:[%s1 + $0xf0] sm:$0xff] %v38
  %295 = vst [vmem:[%s1 + $0xf8] sm:$0xff] %v39
  %296 = vst [vmem:[%s1 + $0x100] sm:$0xff] %v40
  %297 = vst [vmem:[%s1 + $0x108] sm:$0xff] %v41
  %298 = vst [vmem:[%s1 + $0x110] sm:$0xff] %v42
  %299 = vst [vmem:[%s1 + $0x118] sm:$0xff] %v43
  %300 = vst [vmem:[%s1 + $0x120] sm:$0xff] %v44
  %301 = vst [vmem:[%s1 + $0x128] sm:$0xff] %v45
  %302 = vst [vmem:[%s1 + $0x130] sm:$0xff] %v46
  %303 = vst [vmem:[%s1 + $0x138] sm:$0xff] %v47
  %304 = vst [vmem:[%s1 + $0x140] sm:$0xff] %v48
  %305 = vst [vmem:[%s1 + $0x148] sm:$0xff] %v49
  %306 = vst [vmem:[%s1 + $0x150] sm:$0xff] %v50
  %307 = vst [vmem:[%s1 + $0x158] sm:$0xff] %v51
  %308 = vst [vmem:[%s1 + $0x160] sm:$0xff] %v52
  %309 = vst [vmem:[%s1 + $0x168] sm:$0xff] %v53
  %310 = vst [vmem:[%s1 + $0x170] sm:$0xff] %v54
  %311 = vst [vmem:[%s1 + $0x178] sm:$0xff] %v55
  %312 = vst [vmem:[%s1 + $0x180] sm:$0xff] %v56
  %313 = vst [vmem:[%s1 + $0x188] sm:$0xff] %v57
  %314 = vst [vmem:[%s1 + $0x190] sm:$0xff] %v58
  %315 = vst [vmem:[%s1 + $0x198] sm:$0xff] %v59
  %316 = vst [vmem:[%s1 + $0x1a0] sm:$0xff] %v60
  %317 = vst [vmem:[%s1 + $0x1a8] sm:$0xff] %v61
  %318 = vst [vmem:[%s1 + $0x1b0] sm:$0xff] %v62
  %319 = vst [vmem:[%s1 + $0x1b8] sm:$0xff] %v63
  %320 = vst [vmem:[%s1 + $0x1c0] sm:$0xff] %v64
  %321 = vst [vmem:[%s1 + $0x1c8] sm:$0xff] %v65
  %322 = vst [vmem:[%s1 + $0x1d0] sm:$0xff] %v66
  %323 = vst [vmem:[%s1 + $0x1d8] sm:$0xff] %v67
  %324 = vst [vmem:[%s1 + $0x1e0] sm:$0xff] %v68
  %325 = vst [vmem:[%s1 + $0x1e8] sm:$0xff] %v69
  %326 = vst [vmem:[%s1 + $0x1f0] sm:$0xff] %v70
  %327 = vst [vmem:[%s1 + $0x1f8] sm:$0xff] %v71
  %328 = vst [vmem:[%s1 + $0x200] sm:$0xff] %v72
  %329 = vst [vmem:[%s1 + $0x208] sm:$0xff] %v73
  %330 = vst [vmem:[%s1 + $0x210] sm:$0xff] %v74
  %331 = vst [vmem:[%s1 + $0x218] sm:$0xff] %v75
  %332 = vst [vmem:[%s1 + $0x220] sm:$0xff] %v76
  %333 = vst [vmem:[%s1 + $0x228] sm:$0xff] %v77
  %334 = vst [vmem:[%s1 + $0x230] sm:$0xff] %v78
  %335 = vst [vmem:[%s1 + $0x238] sm:$0xff] %v79
  %336 = vst [vmem:[%s1 + $0x240] sm:$0xff] %v80
  %337 = vst [vmem:[%s1 + $0x248] sm:$0xff] %v81
  %338 = vst [vmem:[%s1 + $0x250] sm:$0xff] %v82
  %339 = vst [vmem:[%s1 + $0x258] sm:$0xff] %v83
  %340 = vst [vmem:[%s1 + $0x260] sm:$0xff] %v84
  %341 = vst [vmem:[%s1 + $0x268] sm:$0xff] %v85
  %342 = vst [vmem:[%s1 + $0x270] sm:$0xff] %v86
  %343 = vst [vmem:[%s1 + $0x278] sm:$0xff] %v87
  %344 = vst [vmem:[%s1 + $0x280] sm:$0xff] %v88
  %345 = vst [vmem:[%s1 + $0x288] sm:$0xff] %v89
  %346 = vst [vmem:[%s1 + $0x290] sm:$0xff] %v90
  %347 = vst [vmem:[%s1 + $0x298] sm:$0xff] %v91
  %348 = vst [vmem:[%s1 + $0x2a0] sm:$0xff] %v92
  %349 = vst [vmem:[%s1 + $0x2a8] sm:$0xff] %v93
  %350 = vst [vmem:[%s1 + $0x2b0] sm:$0xff] %v94
  %351 = vst [vmem:[%s1 + $0x2b8] sm:$0xff] %v95
  %352 = vst [vmem:[%s1 + $0x2c0] sm:$0xff] %v96
  %353 = vst [vmem:[%s1 + $0x2c8] sm:$0xff] %v97
  %354 = vst [vmem:[%s1 + $0x2d0] sm:$0xff] %v98
  %355 = vst [vmem:[%s1 + $0x2d8] sm:$0xff] %v99
  %356 = vst [vmem:[%s1 + $0x2e0] sm:$0xff] %v100
  %357 = vst [vmem:[%s1 + $0x2e8] sm:$0xff] %v101
  %358 = vst [vmem:[%s1 + $0x2f0] sm:$0xff] %v102
  %359 = vst [vmem:[%s1 + $0x2f8] sm:$0xff] %v103
  %360 = vst [vmem:[%s1 + $0x300] sm:$0xff] %v104
  %361 = vst [vmem:[%s1 + $0x308] sm:$0xff] %v105
  %362 = vst [vmem:[%s1 + $0x310] sm:$0xff] %v106
  %363 = vst [vmem:[%s1 + $0x318] sm:$0xff] %v107
  %364 = vst [vmem:[%s1 + $0x320] sm:$0xff] %v108
  %365 = vst [vmem:[%s1 + $0x328] sm:$0xff] %v109
  %366 = vst [vmem:[%s1 + $0x330] sm:$0xff] %v110
  %367 = vst [vmem:[%s1 + $0x338] sm:$0xff] %v111
  %368 = vst [vmem:[%s1 + $0x340] sm:$0xff] %v112
  %369 = vst [vmem:[%s1 + $0x348] sm:$0xff] %v113
  %370 = vst [vmem:[%s1 + $0x350] sm:$0xff] %v114
  %371 = vst [vmem:[%s1 + $0x358] sm:$0xff] %v115
  %372 = vst [vmem:[%s1 + $0x360] sm:$0xff] %v116
  %373 = vst [vmem:[%s1 + $0x368] sm:$0xff] %v117
  %374 = vst [vmem:[%s1 + $0x370] sm:$0xff] %v118
  %375 = vst [vmem:[%s1 + $0x378] sm:$0xff] %v119
  %376 = vst [vmem:[%s1 + $0x380] sm:$0xff] %v120
  %377 = vst [vmem:[%s1 + $0x388] sm:$0xff] %v121
  %378 = vst [vmem:[%s1 + $0x390] sm:$0xff] %v122
  %379 = vst [vmem:[%s1 + $0x398] sm:$0xff] %v123
  %380 = vst [vmem:[%s1 + $0x3a0] sm:$0xff] %v124
  %381 = vst [vmem:[%s1 + $0x3a8] sm:$0xff] %v125
  %382 = vst [vmem:[%s1 + $0x3b0] sm:$0xff] %v126
  %383 = vst [vmem:[%s1 + $0x3b8] sm:$0xff] %v127
  %384 = vst [vmem:[%s1 + $0x3c0] sm:$0xff] %v128
  %385 = vst [vmem:[%s1 + $0x3c8] sm:$0xff] %v129
  %386 = vst [vmem:[%s1 + $0x3d0] sm:$0xff] %v130
  %387 = vst [vmem:[%s1 + $0x3d8] sm:$0xff] %v131
  %388 = vst [vmem:[%s1 + $0x3e0] sm:$0xff] %v132
  %389 = vst [vmem:[%s1 + $0x3e8] sm:$0xff] %v133
  %390 = vst [vmem:[%s1 + $0x3f0] sm:$0xff] %v134
  %391 = vst [vmem:[%s1 + $0x3f8] sm:$0xff] %v135
  %392 = vst [vmem:[%s1 + $0x400] sm:$0xff] %v136
  %393 = vst [vmem:[%s1 + $0x408] sm:$0xff] %v137
  %394 = vst [vmem:[%s1 + $0x410] sm:$0xff] %v138
  %395 = vst [vmem:[%s1 + $0x418] sm:$0xff] %v139
  %396 = vst [vmem:[%s1 + $0x420] sm:$0xff] %v140
  %397 = vst [vmem:[%s1 + $0x428] sm:$0xff] %v141
  %398 = vst [vmem:[%s1 + $0x430] sm:$0xff] %v142
  %399 = vst [vmem:[%s1 + $0x438] sm:$0xff] %v143
  %400 = vst [vmem:[%s1 + $0x440] sm:$0xff] %v144
  %401 = vst [vmem:[%s1 + $0x448] sm:$0xff] %v145
  %402 = vst [vmem:[%s1 + $0x450] sm:$0xff] %v146
  %403 = vst [vmem:[%s1 + $0x458] sm:$0xff] %v147
  %404 = vst [vmem:[%s1 + $0x460] sm:$0xff] %v148
  %405 = vst [vmem:[%s1 + $0x468] sm:$0xff] %v149
  %406 = vst [vmem:[%s1 + $0x470] sm:$0xff] %v150
  %407 = vst [vmem:[%s1 + $0x478] sm:$0xff] %v151
  %408 = vst [vmem:[%s1 + $0x480] sm:$0xff] %v152
  %409 = vst [vmem:[%s1 + $0x488] sm:$0xff] %v153
  %410 = vst [vmem:[%s1 + $0x490] sm:$0xff] %v154
  %411 = vst [vmem:[%s1 + $0x498] sm:$0xff] %v155
  %412 = vst [vmem:[%s1 + $0x4a0] sm:$0xff] %v156
  %413 = vst [vmem:[%s1 + $0x4a8] sm:$0xff] %v157
  %414 = vst [vmem:[%s1 + $0x4b0] sm:$0xff] %v158
  %415 = vst [vmem:[%s1 + $0x4b8] sm:$0xff] %v159
  %416 = vst [vmem:[%s1 + $0x4c0] sm:$0xff] %v160
  %417 = vst [vmem:[%s1 + $0x4c8] sm:$0xff] %v161
  %418 = vst [vmem:[%s1 + $0x4d0] sm:$0xff] %v162
  %419 = vst [vmem:[%s1 + $0x4d8] sm:$0xff] %v163
  %420 = vst [vmem:[%s1 + $0x4e0] sm:$0xff] %v164
  %421 = vst [vmem:[%s1 + $0x4e8] sm:$0xff] %v165
  %422 = vst [vmem:[%s1 + $0x4f0] sm:$0xff] %v166
  %423 = vst [vmem:[%s1 + $0x4f8] sm:$0xff] %v167
  %424 = vst [vmem:[%s1 + $0x500] sm:$0xff] %v168
  %425 = vst [vmem:[%s1 + $0x508] sm:$0xff] %v169
  %426 = vst [vmem:[%s1 + $0x510] sm:$0xff] %v170
  %427 = vst [vmem:[%s1 + $0x518] sm:$0xff] %v171
  %428 = vst [vmem:[%s1 + $0x520] sm:$0xff] %v172
  %429 = vst [vmem:[%s1 + $0x528] sm:$0xff] %v173
  %430 = vst [vmem:[%s1 + $0x530] sm:$0xff] %v174
  %431 = vst [vmem:[%s1 + $0x538] sm:$0xff] %v175
  %432 = vst [vmem:[%s1 + $0x540] sm:$0xff] %v176
  %433 = vst [vmem:[%s1 + $0x548] sm:$0xff] %v177
  %434 = vst [vmem:[%s1 + $0x550] sm:$0xff] %v178
  %435 = vst [vmem:[%s1 + $0x558] sm:$0xff] %v179
  %436 = vst [vmem:[%s1 + $0x560] sm:$0xff] %v180
  %437 = vst [vmem:[%s1 + $0x568] sm:$0xff] %v181
  %438 = vst [vmem:[%s1 + $0x570] sm:$0xff] %v182
  %439 = vst [vmem:[%s1 + $0x578] sm:$0xff] %v183
  %440 = vst [vmem:[%s1 + $0x580] sm:$0xff] %v184
  %441 = vst [vmem:[%s1 + $0x588] sm:$0xff] %v185
  %442 = vst [vmem:[%s1 + $0x590] sm:$0xff] %v186
  %443 = vst [vmem:[%s1 + $0x598] sm:$0xff] %v187
  %444 = vst [vmem:[%s1 + $0x5a0] sm:$0xff] %v188
  %445 = vst [vmem:[%s1 + $0x5a8] sm:$0xff] %v189
  %446 = vst [vmem:[%s1 + $0x5b0] sm:$0xff] %v190
  %447 = vst [vmem:[%s1 + $0x5b8] sm:$0xff] %v191
  %448 = vst [vmem:[%s1 + $0x5c0] sm:$0xff] %v192
  %449 = vst [vmem:[%s1 + $0x5c8] sm:$0xff] %v193
  %450 = vst [vmem:[%s1 + $0x5d0] sm:$0xff] %v194
  %451 = vst [vmem:[%s1 + $0x5d8] sm:$0xff] %v195
  %452 = vst [vmem:[%s1 + $0x5e0] sm:$0xff] %v196
  %453 = vst [vmem:[%s1 + $0x5e8] sm:$0xff] %v197
  %454 = vst [vmem:[%s1 + $0x5f0] sm:$0xff] %v198
  %455 = vst [vmem:[%s1 + $0x5f8] sm:$0xff] %v199
  %456 = vst [vmem:[%s1 + $0x600] sm:$0xff] %v200
  %457 = vst [vmem:[%s1 + $0x608] sm:$0xff] %v201
  %458 = vst [vmem:[%s1 + $0x610] sm:$0xff] %v202
  %459 = vst [vmem:[%s1 + $0x618] sm:$0xff] %v203
  %460 = vst [vmem:[%s1 + $0x620] sm:$0xff] %v204
  %461 = vst [vmem:[%s1 + $0x628] sm:$0xff] %v205
  %462 = vst [vmem:[%s1 + $0x630] sm:$0xff] %v206
  %463 = vst [vmem:[%s1 + $0x638] sm:$0xff] %v207
  %464 = vst [vmem:[%s1 + $0x640] sm:$0xff] %v208
  %465 = vst [vmem:[%s1 + $0x648] sm:$0xff] %v209
  %466 = vst [vmem:[%s1 + $0x650] sm:$0xff] %v210
  %467 = vst [vmem:[%s1 + $0x658] sm:$0xff] %v211
  %468 = vst [vmem:[%s1 + $0x660] sm:$0xff] %v212
  %469 = vst [vmem:[%s1 + $0x668] sm:$0xff] %v213
  %470 = vst [vmem:[%s1 + $0x670] sm:$0xff] %v214
  %471 = vst [vmem:[%s1 + $0x678] sm:$0xff] %v215
  %472 = vst [vmem:[%s1 + $0x680] sm:$0xff] %v216
  %473 = vst [vmem:[%s1 + $0x688] sm:$0xff] %v217
  %474 = vst [vmem:[%s1 + $0x690] sm:$0xff] %v218
  %475 = vst [vmem:[%s1 + $0x698] sm:$0xff] %v219
  %476 = vst [vmem:[%s1 + $0x6a0] sm:$0xff] %v220
  %477 = vst [vmem:[%s1 + $0x6a8] sm:$0xff] %v221
  %478 = vst [vmem:[%s1 + $0x6b0] sm:$0xff] %v222
  %479 = vst [vmem:[%s1 + $0x6b8] sm:$0xff] %v223
  %480 = vst [vmem:[%s1 + $0x6c0] sm:$0xff] %v224
  %481 = vst [vmem:[%s1 + $0x6c8] sm:$0xff] %v225
  %482 = vst [vmem:[%s1 + $0x6d0] sm:$0xff] %v226
  %483 = vst [vmem:[%s1 + $0x6d8] sm:$0xff] %v227
  %484 = vst [vmem:[%s1 + $0x6e0] sm:$0xff] %v228
  %485 = vst [vmem:[%s1 + $0x6e8] sm:$0xff] %v229
  %486 = vst [vmem:[%s1 + $0x6f0] sm:$0xff] %v230
  %487 = vst [vmem:[%s1 + $0x6f8] sm:$0xff] %v231
  %488 = vst [vmem:[%s1 + $0x700] sm:$0xff] %v232
  %489 = vst [vmem:[%s1 + $0x708] sm:$0xff] %v233
  %490 = vst [vmem:[%s1 + $0x710] sm:$0xff] %v234
  %491 = vst [vmem:[%s1 + $0x718] sm:$0xff] %v235
  %492 = vst [vmem:[%s1 + $0x720] sm:$0xff] %v236
  %493 = vst [vmem:[%s1 + $0x728] sm:$0xff] %v237
  %494 = vst [vmem:[%s1 + $0x730] sm:$0xff] %v238
  %495 = vst [vmem:[%s1 + $0x738] sm:$0xff] %v239
  %496 = vst [vmem:[%s1 + $0x740] sm:$0xff] %v240
  %497 = vst [vmem:[%s1 + $0x748] sm:$0xff] %v241
  %498 = vst [vmem:[%s1 + $0x750] sm:$0xff] %v242
  %499 = vst [vmem:[%s1 + $0x758] sm:$0xff] %v243
  %500 = vst [vmem:[%s1 + $0x760] sm:$0xff] %v244
  %501 = vst [vmem:[%s1 + $0x768] sm:$0xff] %v245
  %502 = vst [vmem:[%s1 + $0x770] sm:$0xff] %v246
  %503 = vst [vmem:[%s1 + $0x778] sm:$0xff] %v247
  %504 = vst [vmem:[%s1 + $0x780] sm:$0xff] %v248
  %505 = vst [vmem:[%s1 + $0x788] sm:$0xff] %v249
  %506 = vst [vmem:[%s1 + $0x790] sm:$0xff] %v250
  %507 = vst [vmem:[%s1 + $0x798] sm:$0xff] %v251
  %508 = vst [vmem:[%s1 + $0x7a0] sm:$0xff] %v252
  %509 = vst [vmem:[%s1 + $0x7a8] sm:$0xff] %v253
  %510 = vst [vmem:[%s1 + $0x7b0] sm:$0xff] %v254
  %511 = vst [vmem:[%s1 + $0x7b8] sm:$0xff] %v255
  %512 = vst [vmem:[%s1 + $0x7c0] sm:$0xff] %v256
  %513 = vst [vmem:[%s1 + $0x7c8] sm:$0xff] %v257
  %514 = vst [vmem:[%s1 + $0x7d0] sm:$0xff] %v258
  %515 = vst [vmem:[%s1 + $0x7d8] sm:$0xff] %v259
  %516 = vst [vmem:[%s1 + $0x7e0] sm:$0xff] %v260
  %517 = vst [vmem:[%s1 + $0x7e8] sm:$0xff] %v261
  %518 = vst [vmem:[%s1 + $0x7f0] sm:$0xff] %v262
  %519 = vst [vmem:[%s1 + $0x7f8] sm:$0xff] %v263
  // Predicated region
  $region6: #{_identity_lane_dense.1} parent=0 // pred_check
    _
  $region7: #{_identity_lane_dense.1} parent=0 // pred_check_branch
    %521 = sbr.rel (0) target = $region9
  $region8: #{_identity_lane_dense.1} parent=0 // pred_region
    _
  $region9: #{_identity_lane_dense.1} parent=0 // pred_fallthru
    _
  // Predicated region
  $region10: #{_identity_lane_dense.1} parent=0 // pred_check
    _
  $region11: #{_identity_lane_dense.1} parent=0 // pred_check_branch
    %523 = sbr.rel (0) target = $region13
  $region12: #{_identity_lane_dense.1} parent=0 // pred_region
    _
  $region13: #{_identity_lane_dense.1} parent=0 // pred_fallthru
    _

</llo_original>
